<compile_context>
chip_gen: v5e
topology: v5e:2x2
jax: 0.10.0
libtpu: 0.0.40
codegen_flags: <defaults>
</compile_context>

<pallas_src>
import functools

import jax
import jax.numpy as jnp
from jax.experimental import pallas as pl
from jax.experimental.pallas import tpu as pltpu

BN_EPS = 1e-5


def _round_up(x, m):
    return (x + m - 1) // m * m


# ---------------- pass 1: per-lane sum / sum-of-squares over packed rows ----------------
def rwse_stats_kernel(x_ref, acc_ref, *, n_valid_rows, blocks_per_core):
    """acc_ref: (16, L) resident accumulator; rows 0..7 = sum, rows 8..15 = sum of squares."""
    c = pl.program_id(0)            # TensorCore split ("parallel")
    j = pl.program_id(1)            # reduction steps ("arbitrary")

    @pl.when(j == 0)
    def _():
        acc_ref[...] = jnp.zeros_like(acc_ref)

    blk = x_ref.shape[0]
    gb = c * blocks_per_core + j                                  # un-clamped global block idx
    x = x_ref[...].astype(jnp.float32)                            # (blk, L)
    rows = gb * blk + jax.lax.broadcasted_iota(jnp.int32, x.shape, 0)
    x = jnp.where(rows < n_valid_rows, x, 0.0)                    # mask ragged/duplicated tail

    # Row-group partial sums: pure VPU vreg adds; the 8-sublane collapse is done in the wrapper.
    ps = x.reshape(blk // 8, 8, x.shape[1]).sum(axis=0)           # (8, L)
    pq = (x * x).reshape(blk // 8, 8, x.shape[1]).sum(axis=0)     # (8, L)
    acc_ref[0:8, :] += ps
    acc_ref[8:16, :] += pq


# ---------------- pass 2: out = x_packed @ W_blockdiag + b (parallel over rows) ----------------
def rwse_apply_kernel(x_ref, w_ref, b_ref, o_ref):
    out = jnp.dot(x_ref[...], w_ref[...], preferred_element_type=jnp.float32)
    o_ref[...] = (out + b_ref[...]).astype(o_ref.dtype)


def rwse_node_encoder(x, gamma, beta, weight, bias, *, block_rows=4096):
    """x: [N, D]; weight: [D_out, D_in] (PyTorch Linear layout); bias: [D_out]."""
    n, d = x.shape
    assert n >= 2, "BatchNorm1d in training mode needs at least 2 rows"

    # Lane-packing factor: view `pack` consecutive rows as one 128-lane row when possible.
    pack = 128 // d if (d <= 128 and 128 % d == 0) else 1
    lanes = pack * d

    # Packing needs N % pack == 0; a <=(pack-1)-row zero pad (only when needed) keeps it legal.
    n_pad = _round_up(n, pack)
    x_p = x if n_pad == n else jnp.pad(x, ((0, n_pad - n), (0, 0)))
    np_rows = n_pad // pack
    x_packed = x_p.reshape(np_rows, lanes)            # row-major contiguous => free reshape

    # Row tile: multiple of 8 sublanes, never larger than the packed array (so only the final
    # block is ragged); full-dim block for tiny inputs.
    block_rows = max(8, (int(block_rows) // 8) * 8)
    if np_rows >= 8:
        blk = min(block_rows, (np_rows // 8) * 8)
    else:
        blk = np_rows                                 # full-dim block (always legal)
    grid_n = pl.cdiv(np_rows, blk)

    itemsize = jnp.dtype(x.dtype).itemsize
    tile_bytes = blk * lanes * max(itemsize, 4)
    vmem_limit = min(48 * 1024 * 1024, max(16 * 1024 * 1024, 6 * tile_bytes + (1 << 20)))

    # -------- pass 1: batch statistics (f32 accumulation; masked tail contributes 0) --------
    if np_rows >= 8:
        n_split = 2 if grid_n >= 2 else 1             # v7x: one half per TensorCore
        gh = pl.cdiv(grid_n, n_split)
        acc = pl.pallas_call(
            functools.partial(rwse_stats_kernel,
                              n_valid_rows=np_rows, blocks_per_core=gh),
            out_shape=jax.ShapeDtypeStruct((n_split, 16, lanes), jnp.float32),
            grid=(n_split, gh),
            in_specs=[pl.BlockSpec(
                (blk, lanes),
                lambda c, j: (jnp.minimum(c * gh + j, grid_n - 1), 0))],
            out_specs=pl.BlockSpec((None, 16, lanes), lambda c, j: (c, 0, 0)),
            compiler_params=pltpu.CompilerParams(
                dimension_semantics=("parallel", "arbitrary"),
                vmem_limit_bytes=vmem_limit),
        )(x_packed)
        acc = jnp.sum(acc, axis=0)                                        # (16, L)
        sums = acc[0:8].sum(axis=0).reshape(pack, d).sum(axis=0)          # (D,)
        sqs = acc[8:16].sum(axis=0).reshape(pack, d).sum(axis=0)          # (D,)
    else:
        xf = x.astype(jnp.float32)
        sums = jnp.sum(xf, axis=0)
        sqs = jnp.sum(xf * xf, axis=0)

    inv_n = jnp.float32(1.0 / n)                      # true node count (zero pad rows add 0)
    mean = sums * inv_n
    var = jnp.maximum(sqs * inv_n - mean * mean, 0.0)  # biased variance (BN training)
    inv_std = jax.lax.rsqrt(var + BN_EPS)

    # -------- fold BN affine + linear bias into the matmul (D-sized work, plain XLA) --------
    s = gamma.astype(jnp.float32) * inv_std                                  # (D,)
    wt = weight.T.astype(jnp.float32)                                        # (D_in, D_out)
    w_eff = s[:, None] * wt                                                  # (D, D)
    b_eff = (beta.astype(jnp.float32) - mean * s) @ wt + bias.astype(jnp.float32)
    w_big = jnp.kron(jnp.eye(pack, dtype=jnp.float32), w_eff).astype(x.dtype)  # (L, L) blockdiag
    b_big = jnp.tile(b_eff, pack).reshape(1, lanes)                            # f32 (1, L)

    # -------- pass 2: tiled, embarrassingly parallel apply (megacore-sharded on v7x) --------
    out_packed = pl.pallas_call(
        rwse_apply_kernel,
        out_shape=jax.ShapeDtypeStruct((np_rows, lanes), x.dtype),
        grid=(grid_n,),
        in_specs=[
            pl.BlockSpec((blk, lanes), lambda i: (i, 0)),
            pl.BlockSpec((lanes, lanes), lambda i: (0, 0)),   # resident across grid steps
            pl.BlockSpec((1, lanes), lambda i: (0, 0)),       # resident across grid steps
        ],
        out_specs=pl.BlockSpec((blk, lanes), lambda i: (i, 0)),
        compiler_params=pltpu.CompilerParams(
            dimension_semantics=("parallel",),
            vmem_limit_bytes=vmem_limit),
    )(x_packed, w_big, b_big)

    out = out_packed.reshape(n_pad, d)                 # free reshape back to (N_pad, D)
    return out if n_pad == n else out[:n]


def rwse_reference(x, gamma, beta, weight, bias):
    mean = jnp.mean(x, axis=0, keepdims=True)
    var = jnp.mean((x - mean) ** 2, axis=0, keepdims=True)
    x_hat = (x - mean) / jnp.sqrt(var + BN_EPS)
    y = x_hat * gamma[None, :] + beta[None, :]
    return y @ weight.T + bias[None, :]


if __name__ == "__main__":
    dim_pe = 32        # positional-encoding feature dimension
    num_nodes = 300    # non-multiple of the row tile -> exercises ragged final block + masking

    key = jax.random.PRNGKey(0)
    kx, kw, kb, kg, kbeta = jax.random.split(key, 5)

    x = jax.random.normal(kx, (num_nodes, dim_pe), dtype=jnp.float32)

    # Synthetic parameters matching the module's __init__ shapes:
    #   nn.BatchNorm1d(dim_pe): gamma (dim_pe,), beta (dim_pe,)
    #   nn.Linear(dim_pe, dim_pe): weight (dim_pe, dim_pe), bias (dim_pe,)
    gamma = 1.0 + 0.1 * jax.random.normal(kg, (dim_pe,), dtype=jnp.float32)
    beta = 0.1 * jax.random.normal(kbeta, (dim_pe,), dtype=jnp.float32)
    weight = jax.random.normal(kw, (dim_pe, dim_pe), dtype=jnp.float32) / jnp.sqrt(dim_pe)
    bias = 0.01 * jax.random.normal(kb, (dim_pe,), dtype=jnp.float32)

    fwd = jax.jit(rwse_node_encoder)
    out = jax.block_until_ready(fwd(x, gamma, beta, weight, bias))

    ref = rwse_reference(x, gamma, beta, weight, bias)
    assert out.shape == (num_nodes, dim_pe)
    assert jnp.allclose(out, ref, atol=1e-4, rtol=1e-4), "mismatch vs reference"

    print("KERNEL_OK")
</pallas_src>

<mosaic_0001>
module attributes {stable_mosaic.version = 11 : i64} {
  func.func @rwse_stats_kernel(%arg0: i32, %arg1: i32, %arg2: memref<72x128xf32, #tpu.memory_space<vmem>>, %arg3: memref<1x16x128xf32, #tpu.memory_space<vmem>>) attributes {dimension_semantics = [#tpu.dimension_semantics<parallel>, #tpu.dimension_semantics<arbitrary>], iteration_bounds = array<i64: 2, 1>, scalar_prefetch = 0 : i64, scratch_operands = 0 : i64, tpu.core_type = #tpu.core_type<tc>, window_params = [{transform_indices = @transform_0, window_bounds = array<i64: 72, 128>}, {transform_indices = @transform_1, window_bounds = array<i64: 1, 16, 128>}]} {
    %c0_i32 = arith.constant 0 : i32
    %0 = arith.cmpi eq, %arg1, %c0_i32 : i32
    %1 = arith.extui %0 : i1 to i32
    %c0_i32_0 = arith.constant 0 : i32
    %2 = arith.cmpi ne, %1, %c0_i32_0 : i32
    scf.if %2 {
      %cst_15 = arith.constant 0.000000e+00 : f32
      %31 = vector.broadcast %cst_15 : f32 to vector<16x128xf32>
      %c0_16 = arith.constant 0 : index
      %c0_17 = arith.constant 0 : index
      %c0_18 = arith.constant 0 : index
      %32 = vector.load %arg3[%c0_16, %c0_17, %c0_18] : memref<1x16x128xf32, #tpu.memory_space<vmem>>, vector<1x16x128xf32>
      %33 = vector.shape_cast %32 : vector<1x16x128xf32> to vector<16x128xf32>
      %34 = vector.shape_cast %31 : vector<16x128xf32> to vector<1x16x128xf32>
      tpu.vector_store %arg3[%c0_16, %c0_17, %c0_18], %34 {strides = array<i32>} : memref<1x16x128xf32, #tpu.memory_space<vmem>>, vector<1x16x128xf32>,
    } else {
    }
    %c1_i32 = arith.constant 1 : i32
    %3 = arith.muli %arg0, %c1_i32 : i32
    %4 = arith.addi %3, %arg1 : i32
    %c0 = arith.constant 0 : index
    %c0_1 = arith.constant 0 : index
    %5 = vector.load %arg2[%c0, %c0_1] : memref<72x128xf32, #tpu.memory_space<vmem>>, vector<72x128xf32>
    %c72_i32 = arith.constant 72 : i32
    %6 = arith.muli %4, %c72_i32 : i32
    %7 = tpu.iota {dimensions = array<i32: 0>} : vector<72x128xi32>
    %8 = vector.broadcast %6 : i32 to vector<72x128xi32>
    %9 = arith.addi %8, %7 : vector<72x128xi32>
    %c75_i32 = arith.constant 75 : i32
    %10 = vector.broadcast %c75_i32 : i32 to vector<72x128xi32>
    %11 = arith.cmpi slt, %9, %10 : vector<72x128xi32>
    %cst = arith.constant 0.000000e+00 : f32
    %12 = vector.broadcast %cst : f32 to vector<72x128xf32>
    %13 = arith.select %11, %5, %12 : vector<72x128xi1>, vector<72x128xf32>
    %14 = vector.shape_cast %13 : vector<72x128xf32> to vector<9x8x128xf32>
    %cst_2 = arith.constant dense<0.000000e+00> : vector<8x128xf32>
    %15 = vector.multi_reduction <add>, %14, %cst_2 [0] : vector<9x8x128xf32> to vector<8x128xf32>
    %16 = arith.mulf %13, %13 : vector<72x128xf32>
    %17 = vector.shape_cast %16 : vector<72x128xf32> to vector<9x8x128xf32>
    %cst_3 = arith.constant dense<0.000000e+00> : vector<8x128xf32>
    %18 = vector.multi_reduction <add>, %17, %cst_3 [0] : vector<9x8x128xf32> to vector<8x128xf32>
    %c0_4 = arith.constant 0 : index
    %c0_5 = arith.constant 0 : index
    %c0_6 = arith.constant 0 : index
    %19 = vector.load %arg3[%c0_4, %c0_5, %c0_6] : memref<1x16x128xf32, #tpu.memory_space<vmem>>, vector<1x8x128xf32>
    %20 = vector.shape_cast %19 : vector<1x8x128xf32> to vector<8x128xf32>
    %21 = arith.addf %20, %15 : vector<8x128xf32>
    %c0_7 = arith.constant 0 : index
    %c0_8 = arith.constant 0 : index
    %c0_9 = arith.constant 0 : index
    %22 = vector.load %arg3[%c0_7, %c0_8, %c0_9] : memref<1x16x128xf32, #tpu.memory_space<vmem>>, vector<1x8x128xf32>
    %23 = vector.shape_cast %22 : vector<1x8x128xf32> to vector<8x128xf32>
    %24 = vector.shape_cast %21 : vector<8x128xf32> to vector<1x8x128xf32>
    tpu.vector_store %arg3[%c0_7, %c0_8, %c0_9], %24 {strides = array<i32>} : memref<1x16x128xf32, #tpu.memory_space<vmem>>, vector<1x8x128xf32>,
    %c0_10 = arith.constant 0 : index
    %c8 = arith.constant 8 : index
    %c0_11 = arith.constant 0 : index
    %25 = vector.load %arg3[%c0_10, %c8, %c0_11] : memref<1x16x128xf32, #tpu.memory_space<vmem>>, vector<1x8x128xf32>
    %26 = vector.shape_cast %25 : vector<1x8x128xf32> to vector<8x128xf32>
    %27 = arith.addf %26, %18 : vector<8x128xf32>
    %c0_12 = arith.constant 0 : index
    %c8_13 = arith.constant 8 : index
    %c0_14 = arith.constant 0 : index
    %28 = vector.load %arg3[%c0_12, %c8_13, %c0_14] : memref<1x16x128xf32, #tpu.memory_space<vmem>>, vector<1x8x128xf32>
    %29 = vector.shape_cast %28 : vector<1x8x128xf32> to vector<8x128xf32>
    %30 = vector.shape_cast %27 : vector<8x128xf32> to vector<1x8x128xf32>
    tpu.vector_store %arg3[%c0_12, %c8_13, %c0_14], %30 {strides = array<i32>} : memref<1x16x128xf32, #tpu.memory_space<vmem>>, vector<1x8x128xf32>,
    return
  }
  func.func @transform_0(%arg0: i32, %arg1: i32) -> (i32, i32) {
    %c1_i32 = arith.constant 1 : i32
    %0 = arith.muli %arg0, %c1_i32 : i32
    %1 = arith.addi %0, %arg1 : i32
    %c1_i32_0 = arith.constant 1 : i32
    %2 = arith.minsi %1, %c1_i32_0 : i32
    %c0_i32 = arith.constant 0 : i32
    %c0_i32_1 = arith.constant 0 : i32
    return %2, %c0_i32 : i32, i32
  }
  func.func @transform_1(%arg0: i32, %arg1: i32) -> (i32, i32, i32) {
    %c0_i32 = arith.constant 0 : i32
    %c0_i32_0 = arith.constant 0 : i32
    %c0_i32_1 = arith.constant 0 : i32
    return %arg0, %c0_i32, %c0_i32_0 : i32, i32, i32
  }
}

module attributes {stable_mosaic.version = 11 : i64} {
  func.func @rwse_apply_kernel(%arg0: i32, %arg1: memref<72x128xf32, #tpu.memory_space<vmem>>, %arg2: memref<128x128xf32, #tpu.memory_space<vmem>>, %arg3: memref<1x128xf32, #tpu.memory_space<vmem>>, %arg4: memref<72x128xf32, #tpu.memory_space<vmem>>) attributes {dimension_semantics = [#tpu.dimension_semantics<parallel>], iteration_bounds = array<i64: 2>, scalar_prefetch = 0 : i64, scratch_operands = 0 : i64, tpu.core_type = #tpu.core_type<tc>, window_params = [{transform_indices = @transform_0, window_bounds = array<i64: 72, 128>}, {pipeline_mode = #tpu.pipeline_mode<synchronous>, transform_indices = @transform_1, window_bounds = array<i64: 128, 128>}, {pipeline_mode = #tpu.pipeline_mode<synchronous>, transform_indices = @transform_2, window_bounds = array<i64: 1, 128>}, {transform_indices = @transform_3, window_bounds = array<i64: 72, 128>}]} {
    %c0 = arith.constant 0 : index
    %c0_0 = arith.constant 0 : index
    %0 = vector.load %arg1[%c0, %c0_0] : memref<72x128xf32, #tpu.memory_space<vmem>>, vector<72x128xf32>
    %c0_1 = arith.constant 0 : index
    %c0_2 = arith.constant 0 : index
    %1 = vector.load %arg2[%c0_1, %c0_2] : memref<128x128xf32, #tpu.memory_space<vmem>>, vector<128x128xf32>
    %cst = arith.constant dense<0.000000e+00> : vector<72x128xf32>
    %2 = tpu.matmul %0, %1, %cst {dimension_numbers = #tpu.dot_dimension_numbers<[1], [0], [0], [1], [0, 0, 1, 1], [], []>} : vector<72x128xf32>, vector<128x128xf32>, vector<72x128xf32> -> vector<72x128xf32>
    %c0_3 = arith.constant 0 : index
    %c0_4 = arith.constant 0 : index
    %3 = vector.load %arg3[%c0_3, %c0_4] : memref<1x128xf32, #tpu.memory_space<vmem>>, vector<1x128xf32>
    %4 = vector.broadcast %3 : vector<1x128xf32> to vector<72x128xf32>
    %5 = arith.addf %2, %4 : vector<72x128xf32>
    %c0_5 = arith.constant 0 : index
    %c0_6 = arith.constant 0 : index
    %6 = vector.load %arg4[%c0_5, %c0_6] : memref<72x128xf32, #tpu.memory_space<vmem>>, vector<72x128xf32>
    tpu.vector_store %arg4[%c0_5, %c0_6], %5 {strides = array<i32>} : memref<72x128xf32, #tpu.memory_space<vmem>>, vector<72x128xf32>,
    return
  }
  func.func @transform_0(%arg0: i32) -> (i32, i32) {
    %c0_i32 = arith.constant 0 : i32
    %c0_i32_0 = arith.constant 0 : i32
    return %arg0, %c0_i32 : i32, i32
  }
  func.func @transform_1(%arg0: i32) -> (i32, i32) {
    %c0_i32 = arith.constant 0 : i32
    %c0_i32_0 = arith.constant 0 : i32
    %c0_i32_1 = arith.constant 0 : i32
    return %c0_i32, %c0_i32_0 : i32, i32
  }
  func.func @transform_2(%arg0: i32) -> (i32, i32) {
    %c0_i32 = arith.constant 0 : i32
    %c0_i32_0 = arith.constant 0 : i32
    %c0_i32_1 = arith.constant 0 : i32
    return %c0_i32, %c0_i32_0 : i32, i32
  }
  func.func @transform_3(%arg0: i32) -> (i32, i32) {
    %c0_i32 = arith.constant 0 : i32
    %c0_i32_0 = arith.constant 0 : i32
    return %arg0, %c0_i32 : i32, i32
  }
}

</mosaic_0001>

<llo_original>
// kernel: tile.8
$region0: #{tile.8}
  #allocation0 [shape = 's32[1]{0}', space=sflag, size = 0x4, scoped, tag = 'scoped memory for tile.8']
  %s0 = inlined_call_operand.vmem [shape: f32[32], index: 0, kind: input, shape index: {}]
  %s1 = inlined_call_operand.vmem [shape: f32[4,32], index: 1, kind: output, shape index: {}]
  // Predicated region
  $region2: #{tile.8} parent=0 // pred_check
    _
  $region3: #{tile.8} parent=0 // pred_check_branch
    %3 = sbr.rel (0) target = $region5
  $region4: #{tile.8} parent=0 // pred_region
    _
  $region5: #{tile.8} parent=0 // pred_fallthru
    _
  %v4 = vld [vmem:[%s0] ss:$0 sm:$0xff]
  %5 = vst [vmem:[%s1] sm:$0xf] %v4

// kernel: tile.9
$region0: #{tile.9}
  %s0 = inlined_call_operand.vmem [shape: f32[4,32], index: 0, kind: input, shape index: {}]
  %s1 = inlined_call_operand.vmem [shape: f32[1,128], index: 1, kind: output, shape index: {}]
  $region1: #{tile.9} parent=0
    #allocation0 [shape = 'u8[4096]{0}', space=vmem, size = 0x1000, scoped, tag = 'scoped mem for output reshape']
    #allocation1 [shape = 'u8[4096]{0}', space=vmem, size = 0x1000, scoped, tag = 'scoped mem for input reshape']
    %s3 = ssub.s32 16, 1
    %v4 = vld [vmem:[%s0] sm:%s3]
    %5 = vst [vmem:[#allocation1] sm:%s3] %v4
    %v6 = vld [vmem:[#allocation1] sm:$0x1]
    %vm7 = vcmask 261120
    %8 = vst.msk [vmem:[#allocation0] sm:$0x1] %vm7, %v6
    %s9 = scalar_lea.vmem [#allocation1], 3
    %v10 = vld [vmem:[%s9] sm:$0x1]
    %11 = vrot.lane.b32.xlu0 %v10, 96
    %v12 = vpop.permute.xlu0 %11
    %vm13 = vcmask 1048320
    %14 = vst.msk [vmem:[#allocation0] sm:$0x1] %vm13, %v12
    %s15 = scalar_lea.vmem [#allocation1], 2
    %v16 = vld [vmem:[%s15] sm:$0x1]
    %17 = vrot.lane.b32.xlu0 %v16, 64
    %v18 = vpop.permute.xlu0 %17
    %vm19 = vcmask 785920
    %20 = vst.msk [vmem:[#allocation0] sm:$0x1] %vm19, %v18
    %s21 = scalar_lea.vmem [#allocation1], 1
    %v22 = vld [vmem:[%s21] sm:$0x1]
    %23 = vrot.lane.b32.xlu0 %v22, 32
    %v24 = vpop.permute.xlu0 %23
    %vm25 = vcmask 523520
    %26 = vst.msk [vmem:[#allocation0] sm:$0x1] %vm25, %v24
    %s28 = ssub.s32 2, 1
    %v29 = vld [vmem:[#allocation0] sm:%s28]
    %s31 = ssub.s32 2, 1
    %32 = vst [vmem:[%s1] sm:%s31] %v29

// kernel: rwse_node_encoder.2
$region0: #{rwse_node_encoder.2}
  #allocation0 [shape = 'u32[]', space=smem, size = 0x4, offset = 0x4, fixed_abs, tag = 'smem constant byte address 0x4 - core index']
  #allocation1 [shape = 'u32[72,128]{1,0:T(1,128)}', space=vmem, size = 0x9000, scoped, tag = 'internal scratch']
  %s0 = inlined_call_operand.vmem [shape: f32[75,128], index: 0, kind: input, shape index: {}]
  %s1 = inlined_call_operand.vmem [shape: f32[2,16,128], index: 1, kind: output, shape index: {}]
  %s2 = sld [smem:[#allocation0]]
  $region41: #{rwse_node_encoder.2} parent=0
    _
  %s4 = ssub.s32 1, %s2
  %s5 = scalar_select 0, %s4, %s2
  loop: start=0, step=1, limit=4
  $region2: #{rwse_node_encoder.2} parent=0 // loop_pre_header
    _
  $region3: #{rwse_node_encoder.2} parent=0 // loop_header
    %s7 = sphi 0, %s11
    %p8 = scmp.ge.s32.totalorder %s7, 4
    %s14 = sphi 0, %s26
    %s15 = sphi 0, %s22
    %s16 = sphi 0, %s14
    %s17 = sphi 0, %s15
    %s18 = sphi 0, %s16
    %s19 = sphi 0, %s17
    %s35 = sphi 0, %s37
    %s38 = sphi 0, %s35
    %s39 = sphi 0, %s38
    %s55 = sphi 0, %s39
    %s61 = sphi 0, %s63
    %s64 = sphi 0, %s61
    %s65 = sphi 0, %s64
    %s81 = sphi 0, %s65
  $region4: #{rwse_node_encoder.2} parent=0 // loop_header_branch
    %10 = sbr.rel (%p8) target = $region8
  $region5: #{rwse_node_encoder.2} parent=0 // loop_body
    %s12 = ssub.s32 %s7, 1
    %s13 = ssub.s32 %s7, 2
    %s20 = sadd.s32 1, %s15
    %p21 = scmp.ge.s32.totalorder %s20, 1
    %s22 = scalar_select %p21, 0, %s20
    %s23 = sadd.s32 1, %s14
    %s24 = scalar_select %p21, %s23, %s14
    %p25 = scmp.ge.s32.totalorder %s24, 2
    %s26 = scalar_select %p25, 0, %s24
    %s27 = sadd.s32 %s14, %s15
    %p28 = scmp.lt.s32.totalorder %s27, 1
    %s29 = scalar_select %p28, %s27, 1
    %s30 = sadd.s32 %s26, %s22
    %p31 = scmp.lt.s32.totalorder %s30, 1
    %s32 = scalar_select %p31, %s30, 1
    %s33 = ssub.s32 %s29, %s32
    %p34 = scmp.eq.s32.totalorder %s33, 0
    %s36 = sadd.s32 %s35, 1
    %s37 = scalar_select %p34, %s35, %s36
    %p40 = pneg %p34
    %p41 = scmp.eq.s32.totalorder %s7, 1
    %p42 = por %p40, %p41
    %p43 = scmp.ne.s32.totalorder %s35, %s38
    %p44 = scmp.eq.s32.totalorder %s7, 0
    %p45 = por %p43, %p44
    %p46 = scmp.ne.s32.totalorder %s35, %s38
    %p47 = scmp.eq.s32.totalorder %s12, 1
    %p48 = por %p46, %p47
    %p49 = scmp.ne.s32.totalorder %s38, %s39
    %p50 = scmp.eq.s32.totalorder %s12, 0
    %p51 = por %p49, %p50
    %p52 = scmp.ne.s32.totalorder %s38, %s39
    %p53 = scmp.eq.s32.totalorder %s13, 1
    %p54 = por %p52, %p53
    %p56 = scmp.ne.s32.totalorder %s39, %s55
    %p57 = scmp.eq.s32.totalorder %s13, 0
    %p58 = por %p56, %p57
    %s59 = ssub.s32 %s14, %s26
    %p60 = scmp.eq.s32.totalorder %s59, 0
    %s62 = sadd.s32 %s61, 1
    %s63 = scalar_select %p60, %s61, %s62
    %p66 = pneg %p60
    %p67 = scmp.eq.s32.totalorder %s7, 1
    %p68 = por %p66, %p67
    %p69 = scmp.ne.s32.totalorder %s61, %s64
    %p70 = scmp.eq.s32.totalorder %s7, 0
    %p71 = por %p69, %p70
    %p72 = scmp.ne.s32.totalorder %s61, %s64
    %p73 = scmp.eq.s32.totalorder %s12, 1
    %p74 = por %p72, %p73
    %p75 = scmp.ne.s32.totalorder %s64, %s65
    %p76 = scmp.eq.s32.totalorder %s12, 0
    %p77 = por %p75, %p76
    %p78 = scmp.ne.s32.totalorder %s64, %s65
    %p79 = scmp.eq.s32.totalorder %s13, 1
    %p80 = por %p78, %p79
    %p82 = scmp.ne.s32.totalorder %s65, %s81
    %p83 = scmp.eq.s32.totalorder %s13, 0
    %p84 = por %p82, %p83
    %p85 = scmp.le.s32.totalorder 1, %s7
    %p86 = scmp.lt.s32.totalorder %s7, 3
    %p87 = pnand %p85, %p86
    %p88 = pneg %p87
    // Predicated region
    $region9: #{rwse_node_encoder.2} parent=5 // pred_check
      _
    $region10: #{rwse_node_encoder.2} parent=5 // pred_check_branch
      %90 = sbr.rel (%p87) target = $region12
    $region11: #{rwse_node_encoder.2} parent=5 // pred_region
      %s91 = ssub.s32 %s7, 1
    $region12: #{rwse_node_encoder.2} parent=5 // pred_fallthru
      _
    %p92 = scmp.lt.s32.totalorder %s7, 2
    // Predicated region
    $region13: #{rwse_node_encoder.2} parent=5 // pred_check
      %p93 = pneg %p92
    $region14: #{rwse_node_encoder.2} parent=5 // pred_check_branch
      %95 = sbr.rel (%p93) target = $region16
    $region15: #{rwse_node_encoder.2} parent=5 // pred_region
      // Predicated region
      $region17: #{rwse_node_encoder.2} parent=15 // pred_check
        %p96 = pneg %p45
      $region18: #{rwse_node_encoder.2} parent=15 // pred_check_branch
        %98 = sbr.rel (%p96) target = $region20
      $region19: #{rwse_node_encoder.2} parent=15 // pred_region
        %s99 = sadd.s32 %s14, %s15
        %p100 = scmp.lt.s32.totalorder %s99, 1
        %s101 = scalar_select %p100, %s99, 1
        %s102 = smul.u32 9, %s101
        %s103 = ssub.s32 10, %s102
        %p104 = scmp.lt.s32.totalorder %s103, 9
        %s105 = scalar_select %p104, %s103, 9
        %s106 = smul.u32 8, %s105
        %p107 = scmp.lt.s32.totalorder %s102, 9
        %s108 = scalar_select %p107, %s102, 9
        %s109 = smul.addr %s108, 8
        %s110 = scalar_lea.vmem %s0, %s109
        %s111 = sadd.s32 %s14, %s15
        %p112 = scmp.lt.s32.totalorder %s111, 1
        %s113 = scalar_select %p112, %s111, 1
        %s114 = smul.u32 9, %s113
        %s115 = ssub.s32 10, %s114
        %p116 = scmp.lt.s32.totalorder %s115, 9
        %s117 = scalar_select %p116, %s115, 9
        %s118 = smul.u32 8, %s117
      $region20: #{rwse_node_encoder.2} parent=15 // pred_fallthru
        _
    $region16: #{rwse_node_encoder.2} parent=5 // pred_fallthru
      _
    %p119 = scmp.le.s32.totalorder 1, %s7
    %p120 = scmp.lt.s32.totalorder %s7, 3
    %p121 = pnand %p119, %p120
    %p122 = pneg %p121
    // Predicated region
    $region21: #{rwse_node_encoder.2} parent=5 // pred_check
      _
    $region22: #{rwse_node_encoder.2} parent=5 // pred_check_branch
      %124 = sbr.rel (%p121) target = $region24
    $region23: #{rwse_node_encoder.2} parent=5 // pred_region
      %s125 = ssub.s32 %s7, 1
      %s126 = sadd.s32 %s16, %s17
      %p127 = scmp.lt.s32.totalorder %s126, 1
      %s128 = scalar_select %p127, %s126, 1
      %s129 = smul.u32 9, %s128
      %s130 = ssub.s32 10, %s129
      %p131 = scmp.lt.s32.totalorder %s130, 9
      %s132 = scalar_select %p131, %s130, 9
      %s133 = smul.u32 8, %s132
      %p134 = scmp.lt.s32.totalorder %s129, 9
      %s135 = scalar_select %p134, %s129, 9
      %s136 = smul.addr %s135, 8
      %s137 = scalar_lea.vmem %s0, %s136
      %p138 = pneg %p51
      %p139 = pneg %p48
      %p140 = pneg %p77
      %p141 = pneg %p74
      %p142 = scmp.lt.s32.totalorder %s16, 1
      %s143 = scalar_select %p142, %s16, 1
      %s144 = smul.addr %s143, 2
      %s145 = smul.addr %s144, 8
      %s146 = scalar_lea.vmem %s1, %s145
      %s147 = sadd.s32 %s16, %s17
      %p148 = scmp.lt.s32.totalorder %s147, 1
      %s149 = scalar_select %p148, %s147, 1
      %s150 = smul.u32 9, %s149
      %s151 = ssub.s32 10, %s150
      %p152 = scmp.lt.s32.totalorder %s151, 9
      %s153 = scalar_select %p152, %s151, 9
      %s154 = smul.u32 8, %s153
      %p155 = scmp.lt.s32.totalorder %s150, 9
      %s156 = scalar_select %p155, %s150, 9
      %s157 = smul.addr %s156, 8
      %s158 = scalar_lea.vmem %s0, %s157
      %s159 = sadd.s32 %s16, %s17
      %p160 = scmp.lt.s32.totalorder %s159, 1
      %s161 = scalar_select %p160, %s159, 1
      %s162 = smul.u32 9, %s161
      %s163 = ssub.s32 10, %s162
      %p164 = scmp.lt.s32.totalorder %s163, 9
      %s165 = scalar_select %p164, %s163, 9
      %s166 = smul.u32 8, %s165
      %p167 = scmp.lt.s32.totalorder %s16, 1
      %s168 = scalar_select %p167, %s16, 1
      %s169 = smul.addr %s168, 2
      %s170 = smul.addr %s169, 8
      %s171 = scalar_lea.vmem %s1, %s170
      %p172 = scmp.eq.s32.totalorder %s17, 0
      // Predicated region
      $region25: #{rwse_node_encoder.2} parent=23 // pred_check
        %p173 = pneg %p172
      $region26: #{rwse_node_encoder.2} parent=23 // pred_check_branch
        %175 = sbr.rel (%p173) target = $region28
      $region27: #{rwse_node_encoder.2} parent=23 // pred_region
        %176 = vst [vmem:[%s171] sm:$0xff] 0.0
        %177 = vst [vmem:[%s171 + $0x8] sm:$0xff] 0.0
      $region28: #{rwse_node_encoder.2} parent=23 // pred_fallthru
        _
      %s178 = sadd.s32 %s16, %s17
      %v179 = vld [vmem:[%s158] sm:$0xff]
      %v180 = vld [vmem:[%s158 + $0x8] sm:$0xff]
      %v181 = vld [vmem:[%s158 + $0x10] sm:$0xff]
      %v182 = vld [vmem:[%s158 + $0x18] sm:$0xff]
      %v183 = vld [vmem:[%s158 + $0x20] sm:$0xff]
      %v184 = vld [vmem:[%s158 + $0x28] sm:$0xff]
      %v185 = vld [vmem:[%s158 + $0x30] sm:$0xff]
      %v186 = vld [vmem:[%s158 + $0x38] sm:$0xff]
      %v187 = vld [vmem:[%s158 + $0x40] sm:$0xff]
      %s188 = smul.u32 %s178, 72
      %v189 = vlaneseq
      %v190 = vshrl.u32 %v189, 7
      %v191 = vadd.s32 %v190, 8
      %v192 = vadd.s32 %v190, 16
      %v193 = vadd.s32 %v190, 24
      %v194 = vadd.s32 %v190, 32
      %v195 = vadd.s32 %v190, 40
      %v196 = vadd.s32 %v190, 48
      %v197 = vadd.s32 %v190, 56
      %v198 = vadd.s32 %v190, 64
      %v199 = vstv %s188
      %v200 = vadd.s32 %v199, %v190
      %v201 = vadd.s32 %v199, %v191
      %v202 = vadd.s32 %v199, %v192
      %v203 = vadd.s32 %v199, %v193
      %v204 = vadd.s32 %v199, %v194
      %v205 = vadd.s32 %v199, %v195
      %v206 = vadd.s32 %v199, %v196
      %v207 = vadd.s32 %v199, %v197
      %v208 = vadd.s32 %v199, %v198
      %vm209 = vcmp.lt.s32.totalorder %v200, 75
      %vm210 = vcmp.lt.s32.totalorder %v201, 75
      %vm211 = vcmp.lt.s32.totalorder %v202, 75
      %vm212 = vcmp.lt.s32.totalorder %v203, 75
      %vm213 = vcmp.lt.s32.totalorder %v204, 75
      %vm214 = vcmp.lt.s32.totalorder %v205, 75
      %vm215 = vcmp.lt.s32.totalorder %v206, 75
      %vm216 = vcmp.lt.s32.totalorder %v207, 75
      %vm217 = vcmp.lt.s32.totalorder %v208, 75
      %v218 = vsel %vm209, %v179, 0.0
      %v219 = vsel %vm210, %v180, 0.0
      %v220 = vsel %vm211, %v181, 0.0
      %v221 = vsel %vm212, %v182, 0.0
      %v222 = vsel %vm213, %v183, 0.0
      %v223 = vsel %vm214, %v184, 0.0
      %v224 = vsel %vm215, %v185, 0.0
      %v225 = vsel %vm216, %v186, 0.0
      %v226 = vsel %vm217, %v187, 0.0
      %v227 = vadd.f32 %v218, %v219
      %v228 = vadd.f32 %v227, %v220
      %v229 = vadd.f32 %v228, %v221
      %v230 = vadd.f32 %v229, %v222
      %v231 = vadd.f32 %v230, %v223
      %v232 = vadd.f32 %v231, %v224
      %v233 = vadd.f32 %v232, %v225
      %v234 = vadd.f32 %v233, %v226
      %v235 = vmul.f32 %v218, %v218
      %v236 = vmul.f32 %v219, %v219
      %v237 = vmul.f32 %v220, %v220
      %v238 = vmul.f32 %v221, %v221
      %v239 = vmul.f32 %v222, %v222
      %v240 = vmul.f32 %v223, %v223
      %v241 = vmul.f32 %v224, %v224
      %v242 = vmul.f32 %v225, %v225
      %v243 = vmul.f32 %v226, %v226
      %v244 = vadd.f32 %v235, %v236
      %v245 = vadd.f32 %v244, %v237
      %v246 = vadd.f32 %v245, %v238
      %v247 = vadd.f32 %v246, %v239
      %v248 = vadd.f32 %v247, %v240
      %v249 = vadd.f32 %v248, %v241
      %v250 = vadd.f32 %v249, %v242
      %v251 = vadd.f32 %v250, %v243
      %v252 = vld [vmem:[%s171] sm:$0xff]
      %v253 = vadd.f32 %v252, %v234
      %254 = vst [vmem:[%s171] sm:$0xff] %v253
      %v255 = vld [vmem:[%s171 + $0x8] sm:$0xff]
      %v256 = vadd.f32 %v255, %v251
      %257 = vst [vmem:[%s171 + $0x8] sm:$0xff] %v256
      %p258 = scmp.lt.s32.totalorder %s16, 1
      %s259 = scalar_select %p258, %s16, 1
      %s260 = smul.addr %s259, 2
      %s261 = smul.addr %s260, 8
      %s262 = scalar_lea.vmem %s1, %s261
      // Predicated region
      $region29: #{rwse_node_encoder.2} parent=23 // pred_check
        %p263 = pneg %p74
      $region30: #{rwse_node_encoder.2} parent=23 // pred_check_branch
        %265 = sbr.rel (%p263) target = $region32
      $region31: #{rwse_node_encoder.2} parent=23 // pred_region
        _
      $region32: #{rwse_node_encoder.2} parent=23 // pred_fallthru
        _
    $region24: #{rwse_node_encoder.2} parent=5 // pred_fallthru
      _
    %p266 = scmp.le.s32.totalorder 2, %s7
    // Predicated region
    $region33: #{rwse_node_encoder.2} parent=5 // pred_check
      %p267 = pneg %p266
    $region34: #{rwse_node_encoder.2} parent=5 // pred_check_branch
      %269 = sbr.rel (%p267) target = $region36
    $region35: #{rwse_node_encoder.2} parent=5 // pred_region
      %s270 = ssub.s32 %s7, 2
      // Predicated region
      $region37: #{rwse_node_encoder.2} parent=35 // pred_check
        %p271 = pneg %p80
      $region38: #{rwse_node_encoder.2} parent=35 // pred_check_branch
        %273 = sbr.rel (%p271) target = $region40
      $region39: #{rwse_node_encoder.2} parent=35 // pred_region
        %p274 = scmp.lt.s32.totalorder %s18, 1
        %s275 = scalar_select %p274, %s18, 1
        %s276 = smul.addr %s275, 2
        %s277 = smul.addr %s276, 8
        %s278 = scalar_lea.vmem %s1, %s277
      $region40: #{rwse_node_encoder.2} parent=35 // pred_fallthru
        _
    $region36: #{rwse_node_encoder.2} parent=5 // pred_fallthru
      _
  $region6: #{rwse_node_encoder.2} parent=0 // loop_footer
    %s11 = sadd.s32 1, %s7
  $region7: #{rwse_node_encoder.2} parent=0 // loop_footer_branch
    %6 = sbr.rel target = $region3
  $region8: #{rwse_node_encoder.2} parent=0 // loop_exit
    _

// kernel: rwse_node_encoder.3
$region0: #{rwse_node_encoder.3}
  #allocation0 [shape = 'u32[]', space=smem, size = 0x4, offset = 0x4, fixed_abs, tag = 'smem constant byte address 0x4 - core index']
  #allocation1 [shape = 'u32[72,128]{1,0:T(1,128)}', space=vmem, size = 0x9000, scoped, tag = 'internal scratch']
  %s0 = inlined_call_operand.vmem [shape: f32[75,128], index: 0, kind: input, shape index: {}]
  %s1 = inlined_call_operand.vmem [shape: f32[128,128], index: 1, kind: input, shape index: {}]
  %s2 = inlined_call_operand.vmem [shape: f32[1,128], index: 2, kind: input, shape index: {}]
  %s3 = inlined_call_operand.vmem [shape: f32[75,128], index: 3, kind: output, shape index: {}]
  %s4 = sld [smem:[#allocation0]]
  $region93: #{rwse_node_encoder.3} parent=0
    _
  %s6 = ssub.s32 1, %s4
  %s7 = scalar_select 0, %s6, %s4
  $region1: #{rwse_node_encoder.3} parent=0
    #allocation2 [shape = 'u8[73728]{0}', space=vmem, size = 0x12000, scoped, tag = 'output window, operand 0']
    loop: start=0, step=1, limit=4
    $region2: #{rwse_node_encoder.3} parent=1 // loop_pre_header
      _
    $region3: #{rwse_node_encoder.3} parent=1 // loop_header
      %s9 = sphi 0, %s13
      %p10 = scmp.ge.s32.totalorder %s9, 4
      %s19 = sphi 0, %s21
      %s22 = sphi 0, %s19
      %s23 = sphi 0, %s22
      %s39 = sphi 0, %s23
      %s43 = sphi 0, %s43
      %s45 = sphi 0, %s43
      %s46 = sphi 0, %s45
      %s60 = sphi 0, %s46
      %s64 = sphi 0, %s64
      %s66 = sphi 0, %s64
      %s67 = sphi 0, %s66
      %s81 = sphi 0, %s67
      %s87 = sphi 0, %s89
      %s90 = sphi 0, %s87
      %s91 = sphi 0, %s90
      %s107 = sphi 0, %s91
    $region4: #{rwse_node_encoder.3} parent=1 // loop_header_branch
      %12 = sbr.rel (%p10) target = $region8
    $region5: #{rwse_node_encoder.3} parent=1 // loop_body
      %s14 = ssub.s32 %s9, 1
      %s15 = ssub.s32 %s9, 2
      %s16 = sadd.s32 %s9, 1
      %s17 = ssub.s32 %s9, %s16
      %p18 = scmp.eq.s32.totalorder %s17, 0
      %s20 = sadd.s32 %s19, 1
      %s21 = scalar_select %p18, %s19, %s20
      %p24 = pneg %p18
      %p25 = scmp.eq.s32.totalorder %s9, 1
      %p26 = por %p24, %p25
      %p27 = scmp.ne.s32.totalorder %s19, %s22
      %p28 = scmp.eq.s32.totalorder %s9, 0
      %p29 = por %p27, %p28
      %p30 = scmp.ne.s32.totalorder %s19, %s22
      %p31 = scmp.eq.s32.totalorder %s14, 1
      %p32 = por %p30, %p31
      %p33 = scmp.ne.s32.totalorder %s22, %s23
      %p34 = scmp.eq.s32.totalorder %s14, 0
      %p35 = por %p33, %p34
      %p36 = scmp.ne.s32.totalorder %s22, %s23
      %p37 = scmp.eq.s32.totalorder %s15, 1
      %p38 = por %p36, %p37
      %p40 = scmp.ne.s32.totalorder %s23, %s39
      %p41 = scmp.eq.s32.totalorder %s15, 0
      %p42 = por %p40, %p41
      %s44 = sadd.s32 %s43, 1
      %p47 = scmp.eq.s32.totalorder %s9, 1
      %p48 = scmp.ne.s32.totalorder %s43, %s45
      %p49 = scmp.eq.s32.totalorder %s9, 0
      %p50 = por %p48, %p49
      %p51 = scmp.ne.s32.totalorder %s43, %s45
      %p52 = scmp.eq.s32.totalorder %s14, 1
      %p53 = por %p51, %p52
      %p54 = scmp.ne.s32.totalorder %s45, %s46
      %p55 = scmp.eq.s32.totalorder %s14, 0
      %p56 = por %p54, %p55
      %p57 = scmp.ne.s32.totalorder %s45, %s46
      %p58 = scmp.eq.s32.totalorder %s15, 1
      %p59 = por %p57, %p58
      %p61 = scmp.ne.s32.totalorder %s46, %s60
      %p62 = scmp.eq.s32.totalorder %s15, 0
      %p63 = por %p61, %p62
      %s65 = sadd.s32 %s64, 1
      %p68 = scmp.eq.s32.totalorder %s9, 1
      %p69 = scmp.ne.s32.totalorder %s64, %s66
      %p70 = scmp.eq.s32.totalorder %s9, 0
      %p71 = por %p69, %p70
      %p72 = scmp.ne.s32.totalorder %s64, %s66
      %p73 = scmp.eq.s32.totalorder %s14, 1
      %p74 = por %p72, %p73
      %p75 = scmp.ne.s32.totalorder %s66, %s67
      %p76 = scmp.eq.s32.totalorder %s14, 0
      %p77 = por %p75, %p76
      %p78 = scmp.ne.s32.totalorder %s66, %s67
      %p79 = scmp.eq.s32.totalorder %s15, 1
      %p80 = por %p78, %p79
      %p82 = scmp.ne.s32.totalorder %s67, %s81
      %p83 = scmp.eq.s32.totalorder %s15, 0
      %p84 = por %p82, %p83
      %s85 = ssub.s32 %s9, %s16
      %p86 = scmp.eq.s32.totalorder %s85, 0
      %s88 = sadd.s32 %s87, 1
      %s89 = scalar_select %p86, %s87, %s88
      %p92 = pneg %p86
      %p93 = scmp.eq.s32.totalorder %s9, 1
      %p94 = por %p92, %p93
      %p95 = scmp.ne.s32.totalorder %s87, %s90
      %p96 = scmp.eq.s32.totalorder %s9, 0
      %p97 = por %p95, %p96
      %p98 = scmp.ne.s32.totalorder %s87, %s90
      %p99 = scmp.eq.s32.totalorder %s14, 1
      %p100 = por %p98, %p99
      %p101 = scmp.ne.s32.totalorder %s90, %s91
      %p102 = scmp.eq.s32.totalorder %s14, 0
      %p103 = por %p101, %p102
      %p104 = scmp.ne.s32.totalorder %s90, %s91
      %p105 = scmp.eq.s32.totalorder %s15, 1
      %p106 = por %p104, %p105
      %p108 = scmp.ne.s32.totalorder %s91, %s107
      %p109 = scmp.eq.s32.totalorder %s15, 0
      %p110 = por %p108, %p109
      %p111 = scmp.le.s32.totalorder 1, %s9
      %p112 = scmp.lt.s32.totalorder %s9, 3
      %p113 = pnand %p111, %p112
      %p114 = pneg %p113
      // Predicated region
      $region9: #{rwse_node_encoder.3} parent=5 // pred_check
        _
      $region10: #{rwse_node_encoder.3} parent=5 // pred_check_branch
        %116 = sbr.rel (%p113) target = $region12
      $region11: #{rwse_node_encoder.3} parent=5 // pred_region
        %s117 = ssub.s32 %s9, 1
        // Predicated region
        $region13: #{rwse_node_encoder.3} parent=11 // pred_check
          %p118 = pneg %p56
        $region14: #{rwse_node_encoder.3} parent=11 // pred_check_branch
          %120 = sbr.rel (%p118) target = $region16
        $region15: #{rwse_node_encoder.3} parent=11 // pred_region
          _
        $region16: #{rwse_node_encoder.3} parent=11 // pred_fallthru
          _
        // Predicated region
        $region17: #{rwse_node_encoder.3} parent=11 // pred_check
          %p121 = pneg %p77
        $region18: #{rwse_node_encoder.3} parent=11 // pred_check_branch
          %123 = sbr.rel (%p121) target = $region20
        $region19: #{rwse_node_encoder.3} parent=11 // pred_region
          _
        $region20: #{rwse_node_encoder.3} parent=11 // pred_fallthru
          _
      $region12: #{rwse_node_encoder.3} parent=5 // pred_fallthru
        _
      %p124 = scmp.lt.s32.totalorder %s9, 2
      // Predicated region
      $region21: #{rwse_node_encoder.3} parent=5 // pred_check
        %p125 = pneg %p124
      $region22: #{rwse_node_encoder.3} parent=5 // pred_check_branch
        %127 = sbr.rel (%p125) target = $region24
      $region23: #{rwse_node_encoder.3} parent=5 // pred_region
        // Predicated region
        $region25: #{rwse_node_encoder.3} parent=23 // pred_check
          %p128 = pneg %p29
        $region26: #{rwse_node_encoder.3} parent=23 // pred_check_branch
          %130 = sbr.rel (%p128) target = $region28
        $region27: #{rwse_node_encoder.3} parent=23 // pred_region
          %s131 = smul.u32 9, %s9
          %s132 = ssub.s32 10, %s131
          %p133 = scmp.lt.s32.totalorder %s132, 9
          %s134 = scalar_select %p133, %s132, 9
          %s135 = smul.u32 8, %s134
          %p136 = scmp.lt.s32.totalorder %s131, 9
          %s137 = scalar_select %p136, %s131, 9
          %s138 = smul.addr %s137, 8
          %s139 = scalar_lea.vmem %s0, %s138
          %s140 = smul.u32 9, %s9
          %s141 = ssub.s32 10, %s140
          %p142 = scmp.lt.s32.totalorder %s141, 9
          %s143 = scalar_select %p142, %s141, 9
          %s144 = smul.u32 8, %s143
        $region28: #{rwse_node_encoder.3} parent=23 // pred_fallthru
          _
      $region24: #{rwse_node_encoder.3} parent=5 // pred_fallthru
        _
      %p145 = scmp.le.s32.totalorder 1, %s9
      %p146 = scmp.lt.s32.totalorder %s9, 3
      %p147 = pnand %p145, %p146
      %p148 = pneg %p147
      // Predicated region
      $region29: #{rwse_node_encoder.3} parent=5 // pred_check
        _
      $region30: #{rwse_node_encoder.3} parent=5 // pred_check_branch
        %150 = sbr.rel (%p147) target = $region32
      $region31: #{rwse_node_encoder.3} parent=5 // pred_region
        %s151 = ssub.s32 %s9, 1
        %s152 = smul.u32 9, %s14
        %s153 = ssub.s32 10, %s152
        %p154 = scmp.lt.s32.totalorder %s153, 9
        %s155 = scalar_select %p154, %s153, 9
        %s156 = smul.u32 8, %s155
        %p157 = scmp.lt.s32.totalorder %s152, 9
        %s158 = scalar_select %p157, %s152, 9
        %s159 = smul.addr %s158, 8
        %s160 = scalar_lea.vmem %s0, %s159
        %p161 = pneg %p35
        %p162 = pneg %p32
        %p163 = pneg %p56
        %p164 = pneg %p53
        %p165 = pneg %p77
        %p166 = pneg %p74
        %p167 = pneg %p103
        %p168 = pneg %p100
        %s169 = sand.u32 %s90, 1
        %s170 = sand.u32 %s90, 1
        %s171 = smul.addr %s170, 72
        %s172 = scalar_lea.vmem [#allocation2], %s171
        %s173 = smul.u32 9, %s14
        %s174 = ssub.s32 10, %s173
        %p175 = scmp.lt.s32.totalorder %s174, 9
        %s176 = scalar_select %p175, %s174, 9
        %s177 = smul.u32 8, %s176
        %p178 = scmp.lt.s32.totalorder %s173, 9
        %s179 = scalar_select %p178, %s173, 9
        %s180 = smul.addr %s179, 8
        %s181 = scalar_lea.vmem %s0, %s180
        %s182 = smul.u32 9, %s14
        %s183 = ssub.s32 10, %s182
        %p184 = scmp.lt.s32.totalorder %s183, 9
        %s185 = scalar_select %p184, %s183, 9
        %s186 = smul.u32 8, %s185
        %s187 = smul.u32 9, %s14
        %s188 = ssub.s32 10, %s187
        %p189 = scmp.lt.s32.totalorder %s188, 9
        %s190 = scalar_select %p189, %s188, 9
        %s191 = smul.u32 8, %s190
        %v192 = vld [vmem:[%s181] sm:$0xff]
        %v193 = vld [vmem:[%s181 + $0x8] sm:$0xff]
        %v194 = vld [vmem:[%s181 + $0x10] sm:$0xff]
        %v195 = vld [vmem:[%s181 + $0x18] sm:$0xff]
        %v196 = vld [vmem:[%s181 + $0x20] sm:$0xff]
        %v197 = vld [vmem:[%s181 + $0x28] sm:$0xff]
        %v198 = vld [vmem:[%s181 + $0x30] sm:$0xff]
        %v199 = vld [vmem:[%s181 + $0x38] sm:$0xff]
        %v200 = vld [vmem:[%s181 + $0x40] sm:$0xff]
        %v201 = vld [vmem:[%s1] sm:$0xff]
        %v202 = vld [vmem:[%s1 + $0x8] sm:$0xff]
        %v203 = vld [vmem:[%s1 + $0x10] sm:$0xff]
        %v204 = vld [vmem:[%s1 + $0x18] sm:$0xff]
        %v205 = vld [vmem:[%s1 + $0x20] sm:$0xff]
        %v206 = vld [vmem:[%s1 + $0x28] sm:$0xff]
        %v207 = vld [vmem:[%s1 + $0x30] sm:$0xff]
        %v208 = vld [vmem:[%s1 + $0x38] sm:$0xff]
        %v209 = vld [vmem:[%s1 + $0x40] sm:$0xff]
        %v210 = vld [vmem:[%s1 + $0x48] sm:$0xff]
        %v211 = vld [vmem:[%s1 + $0x50] sm:$0xff]
        %v212 = vld [vmem:[%s1 + $0x58] sm:$0xff]
        %v213 = vld [vmem:[%s1 + $0x60] sm:$0xff]
        %v214 = vld [vmem:[%s1 + $0x68] sm:$0xff]
        %v215 = vld [vmem:[%s1 + $0x70] sm:$0xff]
        %v216 = vld [vmem:[%s1 + $0x78] sm:$0xff]
        %v217 = vld [vmem:[%s2] sm:$0x1]
        %v219 = vperm.slane %v217, 0
        %221 = vmatpush.msra.mxu0 %v216
        %222 = vmatpush.msra.mxu0 %v215
        %223 = vmatpush.msra.mxu0 %v214
        %224 = vmatpush.msra.mxu0 %v213
        %225 = vmatpush.msra.mxu0 %v212
        %226 = vmatpush.msra.mxu0 %v211
        %227 = vmatpush.msra.mxu0 %v210
        %228 = vmatpush.msra.mxu0 %v209
        %229 = vmatpush.msra.mxu0 %v208
        %230 = vmatpush.msra.mxu0 %v207
        %231 = vmatpush.msra.mxu0 %v206
        %232 = vmatpush.msra.mxu0 %v205
        %233 = vmatpush.msra.mxu0 %v204
        %234 = vmatpush.msra.mxu0 %v203
        %235 = vmatpush.msra.mxu0 %v202
        %236 = vmatpush.msra.mxu0 %v201
        %237 = vmatmul.f32.gmra.mxu0 %v192
        %v238 = vpop.f32.mrf.mxu0
        %v239 = vadd.f32 %v219, %v238
        %240 = vmatmul.f32.gmra.mxu0 %v193
        %v241 = vpop.f32.mrf.mxu0
        %v242 = vadd.f32 %v219, %v241
        %243 = vmatmul.f32.gmra.mxu0 %v194
        %v244 = vpop.f32.mrf.mxu0
        %v245 = vadd.f32 %v219, %v244
        %246 = vmatmul.f32.gmra.mxu0 %v195
        %v247 = vpop.f32.mrf.mxu0
        %v248 = vadd.f32 %v219, %v247
        %249 = vmatmul.f32.gmra.mxu0 %v196
        %v250 = vpop.f32.mrf.mxu0
        %v251 = vadd.f32 %v219, %v250
        %252 = vmatmul.f32.gmra.mxu0 %v197
        %v253 = vpop.f32.mrf.mxu0
        %v254 = vadd.f32 %v219, %v253
        %255 = vmatmul.f32.gmra.mxu0 %v198
        %v256 = vpop.f32.mrf.mxu0
        %v257 = vadd.f32 %v219, %v256
        %258 = vmatmul.f32.gmra.mxu0 %v199
        %v259 = vpop.f32.mrf.mxu0
        %v260 = vadd.f32 %v219, %v259
        %261 = vmatmul.f32.gmra.mxu0 %v200
        %v262 = vpop.f32.mrf.mxu0
        %v263 = vadd.f32 %v219, %v262
        %264 = vdwg.mxu0
        %265 = vst [vmem:[%s172] sm:$0xff] %v239
        %266 = vst [vmem:[%s172 + $0x8] sm:$0xff] %v242
        %267 = vst [vmem:[%s172 + $0x10] sm:$0xff] %v245
        %268 = vst [vmem:[%s172 + $0x18] sm:$0xff] %v248
        %269 = vst [vmem:[%s172 + $0x20] sm:$0xff] %v251
        %270 = vst [vmem:[%s172 + $0x28] sm:$0xff] %v254
        %271 = vst [vmem:[%s172 + $0x30] sm:$0xff] %v257
        %272 = vst [vmem:[%s172 + $0x38] sm:$0xff] %v260
        %273 = vst [vmem:[%s172 + $0x40] sm:$0xff] %v263
        %s274 = sand.u32 %s90, 1
        %s275 = sand.u32 %s90, 1
        %s276 = smul.addr %s275, 72
        %s277 = scalar_lea.vmem [#allocation2], %s276
        // Predicated region
        $region33: #{rwse_node_encoder.3} parent=31 // pred_check
          %p278 = pneg %p100
        $region34: #{rwse_node_encoder.3} parent=31 // pred_check_branch
          %280 = sbr.rel (%p278) target = $region36
        $region35: #{rwse_node_encoder.3} parent=31 // pred_region
          %s281 = smul.u32 9, %s14
          %s282 = ssub.s32 10, %s281
          %p283 = scmp.lt.s32.totalorder %s282, 9
          %s284 = scalar_select %p283, %s282, 9
          %s285 = smul.u32 8, %s284
          %p286 = scmp.ne.s32.totalorder 0, %s285
          %s287 = smul.addr %s281, 8
          %s288 = scalar_lea.vmem %s3, %s287
          // Predicated region
          $region37: #{rwse_node_encoder.3} parent=35 // pred_check
            %p289 = pneg %p286
          $region38: #{rwse_node_encoder.3} parent=35 // pred_check_branch
            %291 = sbr.rel (%p289) target = $region40
          $region39: #{rwse_node_encoder.3} parent=35 // pred_region
            // Predicated region
            $region41: #{rwse_node_encoder.3} parent=39 // pred_check
              _
            $region42: #{rwse_node_encoder.3} parent=39 // pred_check_branch
              %293 = sbr.rel (0) target = $region44
            $region43: #{rwse_node_encoder.3} parent=39 // pred_region
              // Predicated region
              $region63: #{rwse_node_encoder.3} parent=43 // pred_check
                _
              $region64: #{rwse_node_encoder.3} parent=43 // pred_check_branch
                %360 = sbr.rel (0) target = $region66
              $region65: #{rwse_node_encoder.3} parent=43 // pred_region
                %s361 = sdiv.u32.pop %s284, 9
                %s362 = srem.u32.pop %s284, 9
                // While loop
                $region67: #{rwse_node_encoder.3} parent=65 // loop_pre_header
                  _
                $region68: #{rwse_node_encoder.3} parent=65 // loop_header
                  %s364 = sphi 0, %s366
                  %p365 = scmp.ge.s32.totalorder %s364, %s361
                  %s369 = sphi 0, %s392
                  %s370 = sphi %s277, %s395
                  %s371 = sphi %s288, %s396
                $region69: #{rwse_node_encoder.3} parent=65 // loop_header_branch
                  %368 = sbr.rel (%p365) target = $region73
                $region70: #{rwse_node_encoder.3} parent=65 // loop_body
                  %v372 = vld [vmem:[%s370] sm:$0xff]
                  %373 = vst [vmem:[%s371] sm:$0xff] %v372
                  %v374 = vld [vmem:[%s370 + $0x8] sm:$0xff]
                  %375 = vst [vmem:[%s371 + $0x8] sm:$0xff] %v374
                  %v376 = vld [vmem:[%s370 + $0x10] sm:$0xff]
                  %377 = vst [vmem:[%s371 + $0x10] sm:$0xff] %v376
                  %v378 = vld [vmem:[%s370 + $0x18] sm:$0xff]
                  %379 = vst [vmem:[%s371 + $0x18] sm:$0xff] %v378
                  %v380 = vld [vmem:[%s370 + $0x20] sm:$0xff]
                  %381 = vst [vmem:[%s371 + $0x20] sm:$0xff] %v380
                  %v382 = vld [vmem:[%s370 + $0x28] sm:$0xff]
                  %383 = vst [vmem:[%s371 + $0x28] sm:$0xff] %v382
                  %v384 = vld [vmem:[%s370 + $0x30] sm:$0xff]
                  %385 = vst [vmem:[%s371 + $0x30] sm:$0xff] %v384
                  %v386 = vld [vmem:[%s370 + $0x38] sm:$0xff]
                  %387 = vst [vmem:[%s371 + $0x38] sm:$0xff] %v386
                  %v388 = vld [vmem:[%s370 + $0x40] sm:$0xff]
                  %389 = vst [vmem:[%s371 + $0x40] sm:$0xff] %v388
                  %s390 = sadd.s32 1, %s369
                  %p391 = scmp.ge.s32.totalorder %s390, %s361
                  %s392 = scalar_select %p391, 0, %s390
                  %s393 = smul.u32 %s392, 72
                  %s394 = smul.u32 %s392, 72
                  %s395 = scalar_lea.vmem %s277, %s393 [#allocation2]
                  %s396 = scalar_lea.vmem %s288, %s394
                $region71: #{rwse_node_encoder.3} parent=65 // loop_footer
                  %s366 = sadd.s32 %s364, 1
                $region72: #{rwse_node_encoder.3} parent=65 // loop_footer_branch
                  %363 = sbr.rel target = $region68
                $region73: #{rwse_node_encoder.3} parent=65 // loop_exit
                  _
                %s397 = sdiv.u32.pop %s284, 9
                %s398 = srem.u32.pop %s284, 9
                %s399 = smul.u32 %s397, 9
                %s400 = smul.u32 8, %s399
                %s401 = scalar_lea.vmem %s277, %s400 [#allocation2]
                %s402 = smul.u32 8, %s399
                %s403 = scalar_lea.vmem %s288, %s402
                // While loop
                $region74: #{rwse_node_encoder.3} parent=65 // loop_pre_header
                  _
                $region75: #{rwse_node_encoder.3} parent=65 // loop_header
                  %s405 = sphi 0, %s407
                  %p406 = scmp.ge.s32.totalorder %s405, %s398
                  %s410 = sphi 0, %s417
                  %s411 = sphi %s401, %s420
                  %s412 = sphi %s403, %s421
                $region76: #{rwse_node_encoder.3} parent=65 // loop_header_branch
                  %409 = sbr.rel (%p406) target = $region80
                $region77: #{rwse_node_encoder.3} parent=65 // loop_body
                  %v413 = vld [vmem:[%s411] sm:$0xff]
                  %414 = vst [vmem:[%s412] sm:$0xff] %v413
                  %s415 = sadd.s32 1, %s410
                  %p416 = scmp.ge.s32.totalorder %s415, %s398
                  %s417 = scalar_select %p416, 0, %s415
                  %s418 = smul.u32 %s417, 8
                  %s419 = smul.u32 %s417, 8
                  %s420 = scalar_lea.vmem %s401, %s418 [#allocation2]
                  %s421 = scalar_lea.vmem %s403, %s419
                $region78: #{rwse_node_encoder.3} parent=65 // loop_footer
                  %s407 = sadd.s32 %s405, 1
                $region79: #{rwse_node_encoder.3} parent=65 // loop_footer_branch
                  %404 = sbr.rel target = $region75
                $region80: #{rwse_node_encoder.3} parent=65 // loop_exit
                  _
              $region66: #{rwse_node_encoder.3} parent=43 // pred_fallthru
                _
              // Predicated region
              $region81: #{rwse_node_encoder.3} parent=43 // pred_check
                _
              $region82: #{rwse_node_encoder.3} parent=43 // pred_check_branch
                %423 = sbr.rel target = $region84
              $region83: #{rwse_node_encoder.3} parent=43 // pred_region
                _
              $region84: #{rwse_node_encoder.3} parent=43 // pred_fallthru
                _
            $region44: #{rwse_node_encoder.3} parent=39 // pred_fallthru
              _
            // Predicated region
            $region45: #{rwse_node_encoder.3} parent=39 // pred_check
              _
            $region46: #{rwse_node_encoder.3} parent=39 // pred_check_branch
              %295 = sbr.rel target = $region48
            $region47: #{rwse_node_encoder.3} parent=39 // pred_region
              %s297 = ssub.s32 256, 1
              %s298 = sdiv.u32.pop %s284, 9
              %s299 = srem.u32.pop %s284, 9
              // While loop
              $region49: #{rwse_node_encoder.3} parent=47 // loop_pre_header
                _
              $region50: #{rwse_node_encoder.3} parent=47 // loop_header
                %s301 = sphi 0, %s303
                %p302 = scmp.ge.s32.totalorder %s301, %s298
                %s306 = sphi 0, %s329
                %s307 = sphi %s277, %s332
                %s308 = sphi %s288, %s333
              $region51: #{rwse_node_encoder.3} parent=47 // loop_header_branch
                %305 = sbr.rel (%p302) target = $region55
              $region52: #{rwse_node_encoder.3} parent=47 // loop_body
                %v309 = vld [vmem:[%s307] sm:%s297]
                %310 = vst [vmem:[%s308] sm:%s297] %v309
                %v311 = vld [vmem:[%s307 + $0x8] sm:%s297]
                %312 = vst [vmem:[%s308 + $0x8] sm:%s297] %v311
                %v313 = vld [vmem:[%s307 + $0x10] sm:%s297]
                %314 = vst [vmem:[%s308 + $0x10] sm:%s297] %v313
                %v315 = vld [vmem:[%s307 + $0x18] sm:%s297]
                %316 = vst [vmem:[%s308 + $0x18] sm:%s297] %v315
                %v317 = vld [vmem:[%s307 + $0x20] sm:%s297]
                %318 = vst [vmem:[%s308 + $0x20] sm:%s297] %v317
                %v319 = vld [vmem:[%s307 + $0x28] sm:%s297]
                %320 = vst [vmem:[%s308 + $0x28] sm:%s297] %v319
                %v321 = vld [vmem:[%s307 + $0x30] sm:%s297]
                %322 = vst [vmem:[%s308 + $0x30] sm:%s297] %v321
                %v323 = vld [vmem:[%s307 + $0x38] sm:%s297]
                %324 = vst [vmem:[%s308 + $0x38] sm:%s297] %v323
                %v325 = vld [vmem:[%s307 + $0x40] sm:%s297]
                %326 = vst [vmem:[%s308 + $0x40] sm:%s297] %v325
                %s327 = sadd.s32 1, %s306
                %p328 = scmp.ge.s32.totalorder %s327, %s298
                %s329 = scalar_select %p328, 0, %s327
                %s330 = smul.u32 %s329, 72
                %s331 = smul.u32 %s329, 72
                %s332 = scalar_lea.vmem %s277, %s330 [#allocation2]
                %s333 = scalar_lea.vmem %s288, %s331
              $region53: #{rwse_node_encoder.3} parent=47 // loop_footer
                %s303 = sadd.s32 %s301, 1
              $region54: #{rwse_node_encoder.3} parent=47 // loop_footer_branch
                %300 = sbr.rel target = $region50
              $region55: #{rwse_node_encoder.3} parent=47 // loop_exit
                _
              %s334 = sdiv.u32.pop %s284, 9
              %s335 = srem.u32.pop %s284, 9
              %s336 = smul.u32 %s334, 9
              %s337 = smul.u32 8, %s336
              %s338 = scalar_lea.vmem %s277, %s337 [#allocation2]
              %s339 = smul.u32 8, %s336
              %s340 = scalar_lea.vmem %s288, %s339
              // While loop
              $region56: #{rwse_node_encoder.3} parent=47 // loop_pre_header
                _
              $region57: #{rwse_node_encoder.3} parent=47 // loop_header
                %s342 = sphi 0, %s344
                %p343 = scmp.ge.s32.totalorder %s342, %s335
                %s347 = sphi 0, %s354
                %s348 = sphi %s338, %s357
                %s349 = sphi %s340, %s358
              $region58: #{rwse_node_encoder.3} parent=47 // loop_header_branch
                %346 = sbr.rel (%p343) target = $region62
              $region59: #{rwse_node_encoder.3} parent=47 // loop_body
                %v350 = vld [vmem:[%s348] sm:%s297]
                %351 = vst [vmem:[%s349] sm:%s297] %v350
                %s352 = sadd.s32 1, %s347
                %p353 = scmp.ge.s32.totalorder %s352, %s335
                %s354 = scalar_select %p353, 0, %s352
                %s355 = smul.u32 %s354, 8
                %s356 = smul.u32 %s354, 8
                %s357 = scalar_lea.vmem %s338, %s355 [#allocation2]
                %s358 = scalar_lea.vmem %s340, %s356
              $region60: #{rwse_node_encoder.3} parent=47 // loop_footer
                %s344 = sadd.s32 %s342, 1
              $region61: #{rwse_node_encoder.3} parent=47 // loop_footer_branch
                %341 = sbr.rel target = $region57
              $region62: #{rwse_node_encoder.3} parent=47 // loop_exit
                _
            $region48: #{rwse_node_encoder.3} parent=39 // pred_fallthru
              _
          $region40: #{rwse_node_encoder.3} parent=35 // pred_fallthru
            _
          %424 = vnop
        $region36: #{rwse_node_encoder.3} parent=31 // pred_fallthru
          _
      $region32: #{rwse_node_encoder.3} parent=5 // pred_fallthru
        _
      %p425 = scmp.le.s32.totalorder 2, %s9
      // Predicated region
      $region85: #{rwse_node_encoder.3} parent=5 // pred_check
        %p426 = pneg %p425
      $region86: #{rwse_node_encoder.3} parent=5 // pred_check_branch
        %428 = sbr.rel (%p426) target = $region88
      $region87: #{rwse_node_encoder.3} parent=5 // pred_region
        %s429 = ssub.s32 %s9, 2
        // Predicated region
        $region89: #{rwse_node_encoder.3} parent=87 // pred_check
          %p430 = pneg %p106
        $region90: #{rwse_node_encoder.3} parent=87 // pred_check_branch
          %432 = sbr.rel (%p430) target = $region92
        $region91: #{rwse_node_encoder.3} parent=87 // pred_region
          %s433 = sand.u32 %s91, 1
          %s434 = sand.u32 %s91, 1
          %s435 = smul.addr %s434, 72
          %s436 = scalar_lea.vmem [#allocation2], %s435
        $region92: #{rwse_node_encoder.3} parent=87 // pred_fallthru
          _
      $region88: #{rwse_node_encoder.3} parent=5 // pred_fallthru
        _
    $region6: #{rwse_node_encoder.3} parent=1 // loop_footer
      %s13 = sadd.s32 1, %s9
    $region7: #{rwse_node_encoder.3} parent=1 // loop_footer_branch
      %8 = sbr.rel target = $region3
    $region8: #{rwse_node_encoder.3} parent=1 // loop_exit
      _

</llo_original>
